<compile_context>
chip_gen: v6e
topology: v6e:2x2x1
jax: 0.10.0
libtpu: 0.0.40
codegen_flags: <defaults>
</compile_context>

<pallas_src>
import functools

import jax
import jax.numpy as jnp
import numpy as np
from jax.experimental import pallas as pl
from jax.experimental.pallas import tpu as pltpu


def tensor_train_kernel(x_ref, w_ref, bflat_ref, h_ref, oh_ref, guo_ref, bo_ref, o_ref,
                        *, n_ch, ac):
    """One batch tile, all children, all aggregators.

    x_ref    : (bm, n_ch*in_size)
    w_ref    : (n_ch*in_size, n_ch*ac)      block-diagonal over children (ac = n_aggr*rank*rank)
    bflat_ref: (1, n_ch*ac)
    h_ref    : (ac, ac)                     constant 0/1 chain matrix H[(a,p,k),(a',p',k')]=d(a,a')d(k,p')
    oh_ref   : (1, ac)                      1 at rows p == rank-1 (injects b_rank)
    guo_ref  : (ac, n_aggr*out_size)        fused reduce-over-p + block-diag output projection
    bo_ref   : (1, n_aggr*out_size)
    o_ref    : (bm, n_aggr*out_size)
    """
    # All child x aggregator projections in one lane-dense MXU push (+ fused bias add).
    ris = jnp.dot(x_ref[...], w_ref[...], preferred_element_type=jnp.float32) + bflat_ref[...]

    H = h_ref[...]
    onehot = oh_ref[...]

    # Tensor-train chain over child positions, kept in the expanded (a,p,k) lane space.
    #   s holds v[a,p] replicated over k, plus the delta(p, rank-1) that injects b_rank.
    s = onehot                                   # (1, ac); broadcasts over batch on first multiply
    t = None
    for c in range(n_ch):                        # n_ch is small & static -> unrolled at trace time
        blk = ris[:, c * ac:(c + 1) * ac]        # aligned 128-lane static slice
        t = s * blk                              # VPU
        if c + 1 < n_ch:
            s = jnp.dot(t, H, preferred_element_type=jnp.float32) + onehot   # MXU, K = ac

    # Fused reduce + output projection for all aggregators; single lane-dense store.
    out = jnp.dot(t, guo_ref[...], preferred_element_type=jnp.float32) + bo_ref[...]
    o_ref[...] = out.astype(o_ref.dtype)


@functools.partial(jax.jit, static_argnums=(5,), static_argnames=("block_bs",))
def tensor_train_forward(x, U, b, U_out, b_out, rank, *, block_bs=256):
    """Pallas forward. x:(bs,n_ch,in_size); U:(deg,n_aggr,in_size,(rank+1)*rank);
    b:(deg,n_aggr,1,(rank+1)*rank); U_out:(n_aggr,rank,out_size); b_out:(n_aggr,1,out_size)."""
    bs, n_ch, in_size = x.shape
    n_aggr = U.shape[1]
    out_size = U_out.shape[-1]
    rr = rank * rank
    ac = n_aggr * rr
    dtype = x.dtype

    # ---- weights-only preprocessing (exact 0/1 placement, no matmul rounding) ----
    # Drop the never-read last row of each (rank+1, rank) block.
    U_used = U[:n_ch, :, :, :rr]                       # (n_ch, n_aggr, in_size, rr)
    b_used = b[:n_ch, :, 0, :rr]                       # (n_ch, n_aggr, rr)

    # Block-diagonal child projection: W[(c,i), (d, a*rr+j)] = delta(c,d) * U[c,a,i,j].
    U_blk = jnp.transpose(U_used, (0, 2, 1, 3)).reshape(n_ch, in_size, ac)
    W = jnp.zeros((n_ch, in_size, n_ch, ac), dtype)
    W = W.at[jnp.arange(n_ch), :, jnp.arange(n_ch), :].set(U_blk)
    W = W.reshape(n_ch * in_size, n_ch * ac)
    b_flat = b_used.reshape(1, n_ch * ac)

    # Fused reduce-over-p + block-diag output projection:
    #   GUo[(a, p*rank+k), (a', o)] = delta(a,a') * U_out[a, k, o]   (for all p)
    GUo_blocks = jnp.broadcast_to(U_out[:, None, :, :], (n_aggr, rank, rank, out_size))
    GUo = jnp.zeros((n_aggr, rank, rank, n_aggr, out_size), dtype)
    GUo = GUo.at[jnp.arange(n_aggr), :, :, jnp.arange(n_aggr), :].set(GUo_blocks)
    GUo = GUo.reshape(ac, n_aggr * out_size)
    bo = b_out[:, 0, :].reshape(1, n_aggr * out_size)

    # Constant 0/1 helpers (numpy, folded into the program as constants).
    E_np = np.kron(np.eye(n_aggr * rank), np.ones((1, rank)))                     # (n_aggr*rank, ac)
    G_np = np.kron(np.eye(n_aggr), np.kron(np.ones((rank, 1)), np.eye(rank)))     # (ac, n_aggr*rank)
    H_np = G_np @ E_np                                                            # (ac, ac)
    oh_blk = np.zeros(rr)
    oh_blk[(rank - 1) * rank: rr] = 1.0                                           # row rank-1 == b_rank
    onehot_np = np.tile(oh_blk, n_aggr)[None, :]                                  # (1, ac)
    H = jnp.asarray(H_np, dtype)
    onehot = jnp.asarray(onehot_np, dtype)

    x_flat = x.reshape(bs, n_ch * in_size)             # metadata-only flatten

    bm = min(bs, block_bs)
    grid = (pl.cdiv(bs, bm),)

    kernel = functools.partial(tensor_train_kernel, n_ch=n_ch, ac=ac)
    out = pl.pallas_call(
        kernel,
        out_shape=jax.ShapeDtypeStruct((bs, n_aggr * out_size), dtype),
        grid=grid,
        in_specs=[
            pl.BlockSpec((bm, n_ch * in_size), lambda i: (i, 0)),            # x tile per grid step
            pl.BlockSpec((n_ch * in_size, n_ch * ac), lambda i: (0, 0)),     # weights: fetched once
            pl.BlockSpec((1, n_ch * ac), lambda i: (0, 0)),
            pl.BlockSpec((ac, ac), lambda i: (0, 0)),
            pl.BlockSpec((1, ac), lambda i: (0, 0)),
            pl.BlockSpec((ac, n_aggr * out_size), lambda i: (0, 0)),
            pl.BlockSpec((1, n_aggr * out_size), lambda i: (0, 0)),
        ],
        out_specs=pl.BlockSpec((bm, n_aggr * out_size), lambda i: (i, 0)),
        compiler_params=pltpu.CompilerParams(
            dimension_semantics=("parallel",),        # batch tiles shard across TCs (v7x megacore)
        ),
    )(x_flat, W, b_flat, H, onehot, GUo, bo)

    # Already (bs, n_aggr*out_size), matching torch's out.view(bs, -1).
    return out


def tensor_train_reference(x, U, b, U_out, b_out, rank):
    """Pure-JAX mirror of the PyTorch forward (t_size=None, pos_stationarity=False)."""
    bs, n_ch, _ = x.shape
    n_aggr = U.shape[1]
    ris = jnp.einsum('bci,cair->bcar', x, U[:n_ch],
                     precision=jax.lax.Precision.HIGHEST) + b[:n_ch][None, :, :, 0, :]
    rank_ris = None
    for c in range(n_ch):
        aux = ris[:, c].reshape(bs, n_aggr, rank + 1, rank)
        U_rank = aux[:, :, :-1, :]
        b_rank = aux[:, :, -2:-1, :]
        if rank_ris is None:
            rank_ris = b_rank
        else:
            rank_ris = jnp.matmul(rank_ris, U_rank,
                                  precision=jax.lax.Precision.HIGHEST) + b_rank
    out = jnp.matmul(rank_ris, U_out[None],
                     precision=jax.lax.Precision.HIGHEST) + b_out[None]
    return out.reshape(bs, -1)


def xavier_uniform(key, shape, dtype=jnp.float32):
    # torch xavier_uniform_: fan_in = shape[1]*prod(shape[2:]), fan_out = shape[0]*prod(shape[2:])
    recept = int(np.prod(shape[2:])) if len(shape) > 2 else 1
    fan_in = shape[1] * recept
    fan_out = shape[0] * recept
    bound = float(np.sqrt(6.0 / (fan_in + fan_out)))
    return jax.random.uniform(key, shape, dtype, minval=-bound, maxval=bound)


if __name__ == "__main__":
    # small, module-consistent shapes
    bs, n_ch, in_size = 8, 4, 32
    rank, out_size, n_aggr = 8, 16, 2
    max_output_degree = 4
    R = (rank + 1) * rank

    key = jax.random.PRNGKey(0)
    kx, kU, kb, kUo, kbo = jax.random.split(key, 5)

    x = jax.random.normal(kx, (bs, n_ch, in_size), jnp.float32) * 0.5
    U = xavier_uniform(kU, (max_output_degree, n_aggr, in_size, R))
    b = xavier_uniform(kb, (max_output_degree, n_aggr, 1, R))
    U_out = xavier_uniform(kUo, (n_aggr, rank, out_size))
    b_out = xavier_uniform(kbo, (n_aggr, 1, out_size))

    out = tensor_train_forward(x, U, b, U_out, b_out, rank)
    out = jax.block_until_ready(out)

    ref = tensor_train_reference(x, U, b, U_out, b_out, rank)
    np.testing.assert_allclose(np.asarray(out), np.asarray(ref), rtol=5e-2, atol=5e-3)
    assert out.shape == (bs, n_aggr * out_size)

    print("KERNEL_OK")
</pallas_src>

<mosaic_0001>
module attributes {stable_mosaic.version = 11 : i64} {
  func.func @tensor_train_kernel(%arg0: i32, %arg1: memref<8x128xf32, #tpu.memory_space<vmem>>, %arg2: memref<128x512xf32, #tpu.memory_space<vmem>>, %arg3: memref<1x512xf32, #tpu.memory_space<vmem>>, %arg4: memref<128x128xf32, #tpu.memory_space<vmem>>, %arg5: memref<1x128xf32, #tpu.memory_space<vmem>>, %arg6: memref<128x32xf32, #tpu.memory_space<vmem>>, %arg7: memref<1x32xf32, #tpu.memory_space<vmem>>, %arg8: memref<8x32xf32, #tpu.memory_space<vmem>>) attributes {dimension_semantics = [#tpu.dimension_semantics<parallel>], iteration_bounds = array<i64: 1>, scalar_prefetch = 0 : i64, scratch_operands = 0 : i64, tpu.core_type = #tpu.core_type<tc>, window_params = [{transform_indices = @transform_0, window_bounds = array<i64: 8, 128>}, {pipeline_mode = #tpu.pipeline_mode<synchronous>, transform_indices = @transform_1, window_bounds = array<i64: 128, 512>}, {pipeline_mode = #tpu.pipeline_mode<synchronous>, transform_indices = @transform_2, window_bounds = array<i64: 1, 512>}, {pipeline_mode = #tpu.pipeline_mode<synchronous>, transform_indices = @transform_3, window_bounds = array<i64: 128, 128>}, {pipeline_mode = #tpu.pipeline_mode<synchronous>, transform_indices = @transform_4, window_bounds = array<i64: 1, 128>}, {pipeline_mode = #tpu.pipeline_mode<synchronous>, transform_indices = @transform_5, window_bounds = array<i64: 128, 32>}, {pipeline_mode = #tpu.pipeline_mode<synchronous>, transform_indices = @transform_6, window_bounds = array<i64: 1, 32>}, {transform_indices = @transform_7, window_bounds = array<i64: 8, 32>}]} {
    %c0 = arith.constant 0 : index
    %c0_0 = arith.constant 0 : index
    %0 = vector.load %arg1[%c0, %c0_0] : memref<8x128xf32, #tpu.memory_space<vmem>>, vector<8x128xf32>
    %c0_1 = arith.constant 0 : index
    %c0_2 = arith.constant 0 : index
    %1 = vector.load %arg2[%c0_1, %c0_2] : memref<128x512xf32, #tpu.memory_space<vmem>>, vector<128x512xf32>
    %cst = arith.constant dense<0.000000e+00> : vector<8x512xf32>
    %2 = tpu.matmul %0, %1, %cst {dimension_numbers = #tpu.dot_dimension_numbers<[1], [0], [0], [1], [0, 0, 1, 1], [], []>} : vector<8x128xf32>, vector<128x512xf32>, vector<8x512xf32> -> vector<8x512xf32>
    %c0_3 = arith.constant 0 : index
    %c0_4 = arith.constant 0 : index
    %3 = vector.load %arg3[%c0_3, %c0_4] : memref<1x512xf32, #tpu.memory_space<vmem>>, vector<1x512xf32>
    %4 = vector.broadcast %3 : vector<1x512xf32> to vector<8x512xf32>
    %5 = arith.addf %2, %4 : vector<8x512xf32>
    %c0_5 = arith.constant 0 : index
    %c0_6 = arith.constant 0 : index
    %6 = vector.load %arg4[%c0_5, %c0_6] : memref<128x128xf32, #tpu.memory_space<vmem>>, vector<128x128xf32>
    %c0_7 = arith.constant 0 : index
    %c0_8 = arith.constant 0 : index
    %7 = vector.load %arg5[%c0_7, %c0_8] : memref<1x128xf32, #tpu.memory_space<vmem>>, vector<1x128xf32>
    %8 = vector.extract_strided_slice %5 {offsets = [0, 0], sizes = [8, 128], strides = [1, 1]} : vector<8x512xf32> to vector<8x128xf32>
    %9 = vector.broadcast %7 : vector<1x128xf32> to vector<8x128xf32>
    %10 = arith.mulf %9, %8 : vector<8x128xf32>
    %cst_9 = arith.constant dense<0.000000e+00> : vector<8x128xf32>
    %11 = tpu.matmul %10, %6, %cst_9 {dimension_numbers = #tpu.dot_dimension_numbers<[1], [0], [0], [1], [0, 0, 1, 1], [], []>} : vector<8x128xf32>, vector<128x128xf32>, vector<8x128xf32> -> vector<8x128xf32>
    %12 = vector.broadcast %7 : vector<1x128xf32> to vector<8x128xf32>
    %13 = arith.addf %11, %12 : vector<8x128xf32>
    %14 = vector.extract_strided_slice %5 {offsets = [0, 128], sizes = [8, 128], strides = [1, 1]} : vector<8x512xf32> to vector<8x128xf32>
    %15 = arith.mulf %13, %14 : vector<8x128xf32>
    %cst_10 = arith.constant dense<0.000000e+00> : vector<8x128xf32>
    %16 = tpu.matmul %15, %6, %cst_10 {dimension_numbers = #tpu.dot_dimension_numbers<[1], [0], [0], [1], [0, 0, 1, 1], [], []>} : vector<8x128xf32>, vector<128x128xf32>, vector<8x128xf32> -> vector<8x128xf32>
    %17 = vector.broadcast %7 : vector<1x128xf32> to vector<8x128xf32>
    %18 = arith.addf %16, %17 : vector<8x128xf32>
    %19 = vector.extract_strided_slice %5 {offsets = [0, 256], sizes = [8, 128], strides = [1, 1]} : vector<8x512xf32> to vector<8x128xf32>
    %20 = arith.mulf %18, %19 : vector<8x128xf32>
    %cst_11 = arith.constant dense<0.000000e+00> : vector<8x128xf32>
    %21 = tpu.matmul %20, %6, %cst_11 {dimension_numbers = #tpu.dot_dimension_numbers<[1], [0], [0], [1], [0, 0, 1, 1], [], []>} : vector<8x128xf32>, vector<128x128xf32>, vector<8x128xf32> -> vector<8x128xf32>
    %22 = vector.broadcast %7 : vector<1x128xf32> to vector<8x128xf32>
    %23 = arith.addf %21, %22 : vector<8x128xf32>
    %24 = vector.extract_strided_slice %5 {offsets = [0, 384], sizes = [8, 128], strides = [1, 1]} : vector<8x512xf32> to vector<8x128xf32>
    %25 = arith.mulf %23, %24 : vector<8x128xf32>
    %c0_12 = arith.constant 0 : index
    %c0_13 = arith.constant 0 : index
    %26 = vector.load %arg6[%c0_12, %c0_13] : memref<128x32xf32, #tpu.memory_space<vmem>>, vector<128x32xf32>
    %cst_14 = arith.constant dense<0.000000e+00> : vector<8x32xf32>
    %27 = tpu.matmul %25, %26, %cst_14 {dimension_numbers = #tpu.dot_dimension_numbers<[1], [0], [0], [1], [0, 0, 1, 1], [], []>} : vector<8x128xf32>, vector<128x32xf32>, vector<8x32xf32> -> vector<8x32xf32>
    %c0_15 = arith.constant 0 : index
    %c0_16 = arith.constant 0 : index
    %28 = vector.load %arg7[%c0_15, %c0_16] : memref<1x32xf32, #tpu.memory_space<vmem>>, vector<1x32xf32>
    %29 = vector.broadcast %28 : vector<1x32xf32> to vector<8x32xf32>
    %30 = arith.addf %27, %29 : vector<8x32xf32>
    %c0_17 = arith.constant 0 : index
    %c0_18 = arith.constant 0 : index
    %31 = vector.load %arg8[%c0_17, %c0_18] : memref<8x32xf32, #tpu.memory_space<vmem>>, vector<8x32xf32>
    tpu.vector_store %arg8[%c0_17, %c0_18], %30 {strides = array<i32>} : memref<8x32xf32, #tpu.memory_space<vmem>>, vector<8x32xf32>,
    return
  }
  func.func @transform_0(%arg0: i32) -> (i32, i32) {
    %c0_i32 = arith.constant 0 : i32
    %c0_i32_0 = arith.constant 0 : i32
    return %arg0, %c0_i32 : i32, i32
  }
  func.func @transform_1(%arg0: i32) -> (i32, i32) {
    %c0_i32 = arith.constant 0 : i32
    %c0_i32_0 = arith.constant 0 : i32
    %c0_i32_1 = arith.constant 0 : i32
    return %c0_i32, %c0_i32_0 : i32, i32
  }
  func.func @transform_2(%arg0: i32) -> (i32, i32) {
    %c0_i32 = arith.constant 0 : i32
    %c0_i32_0 = arith.constant 0 : i32
    %c0_i32_1 = arith.constant 0 : i32
    return %c0_i32, %c0_i32_0 : i32, i32
  }
  func.func @transform_3(%arg0: i32) -> (i32, i32) {
    %c0_i32 = arith.constant 0 : i32
    %c0_i32_0 = arith.constant 0 : i32
    %c0_i32_1 = arith.constant 0 : i32
    return %c0_i32, %c0_i32_0 : i32, i32
  }
  func.func @transform_4(%arg0: i32) -> (i32, i32) {
    %c0_i32 = arith.constant 0 : i32
    %c0_i32_0 = arith.constant 0 : i32
    %c0_i32_1 = arith.constant 0 : i32
    return %c0_i32, %c0_i32_0 : i32, i32
  }
  func.func @transform_5(%arg0: i32) -> (i32, i32) {
    %c0_i32 = arith.constant 0 : i32
    %c0_i32_0 = arith.constant 0 : i32
    %c0_i32_1 = arith.constant 0 : i32
    return %c0_i32, %c0_i32_0 : i32, i32
  }
  func.func @transform_6(%arg0: i32) -> (i32, i32) {
    %c0_i32 = arith.constant 0 : i32
    %c0_i32_0 = arith.constant 0 : i32
    %c0_i32_1 = arith.constant 0 : i32
    return %c0_i32, %c0_i32_0 : i32, i32
  }
  func.func @transform_7(%arg0: i32) -> (i32, i32) {
    %c0_i32 = arith.constant 0 : i32
    %c0_i32_0 = arith.constant 0 : i32
    return %arg0, %c0_i32 : i32, i32
  }
}

</mosaic_0001>

<llo_original>
// kernel: squeeze.2
$region0: #{squeeze.2}
  %s0 = inlined_call_operand.vmem [shape: f32[4,2,64], index: 0, kind: input, shape index: {}]
  %s1 = inlined_call_operand.vmem [shape: f32[1,512], index: 1, kind: output, shape index: {}]
  $region1: #{squeeze.2} parent=0
    #allocation0 [shape = 'u8[16384]{0}', space=vmem, size = 0x4000, scoped, tag = 'scoped mem for output reshape']
    #allocation1 [shape = 'u8[16384]{0}', space=vmem, size = 0x4000, scoped, tag = 'scoped mem for input reshape']
    %s3 = sshll.u32 1, 2
    %s4 = ssub.s32 %s3, 1
    %s5 = smul.addr 2, 3
    %s6 = scalar_lea.vmem %s0, %s5
    %v7 = vld [vmem:[%s6] sm:%s4]
    %s8 = scalar_lea.vmem [#allocation1], 24
    %9 = vst [vmem:[%s8] sm:%s4] %v7
    %s10 = smul.addr 2, 2
    %s11 = scalar_lea.vmem %s0, %s10
    %v12 = vld [vmem:[%s11] sm:%s4]
    %s13 = scalar_lea.vmem [#allocation1], 16
    %14 = vst [vmem:[%s13] sm:%s4] %v12
    %s15 = scalar_lea.vmem %s0, 2
    %v16 = vld [vmem:[%s15] sm:%s4]
    %s17 = scalar_lea.vmem [#allocation1], 8
    %18 = vst [vmem:[%s17] sm:%s4] %v16
    %v19 = vld [vmem:[%s0] sm:%s4]
    %20 = vst [vmem:[#allocation1] sm:%s4] %v19
    %v21 = vld [vmem:[#allocation1] ss:$8 sm:$0xf]
    %vm22 = vcmask 523264
    %23 = vst.msk [vmem:[#allocation0] ss:$8 sm:$0xf] %vm22, %v21
    %s24 = scalar_lea.vmem [#allocation1], 1
    %v25 = vld [vmem:[%s24] ss:$8 sm:$0xf]
    %26 = vrot.lane.b32.xlu0 %v25, 64
    %v27 = vpop.permute.xlu0 %26
    %vm28 = vcmask 1048064
    %29 = vst.msk [vmem:[#allocation0] ss:$8 sm:$0xf] %vm28, %v27
    %s31 = sshll.u32 1, 1
    %s32 = ssub.s32 %s31, 1
    %v34 = vld [vmem:[#allocation0] sm:%s32]
    %s35 = sshll.u32 1, 1
    %s36 = ssub.s32 %s35, 1
    %37 = vst [vmem:[%s1] sm:%s36] %v34
    %s38 = scalar_lea.vmem [#allocation0], 8
    %v39 = vld [vmem:[%s38] sm:%s32]
    %s40 = sshll.u32 1, 1
    %s41 = ssub.s32 %s40, 1
    %s42 = scalar_lea.vmem %s1, 1
    %43 = vst [vmem:[%s42] sm:%s41] %v39
    %s44 = scalar_lea.vmem [#allocation0], 16
    %v45 = vld [vmem:[%s44] sm:%s32]
    %s46 = sshll.u32 1, 1
    %s47 = ssub.s32 %s46, 1
    %s48 = smul.addr 1, 2
    %s49 = scalar_lea.vmem %s1, %s48
    %50 = vst [vmem:[%s49] sm:%s47] %v45
    %s51 = scalar_lea.vmem [#allocation0], 24
    %v52 = vld [vmem:[%s51] sm:%s32]
    %s53 = sshll.u32 1, 1
    %s54 = ssub.s32 %s53, 1
    %s55 = smul.addr 1, 3
    %s56 = scalar_lea.vmem %s1, %s55
    %57 = vst [vmem:[%s56] sm:%s54] %v52

// kernel: squeeze.3
$region0: #{squeeze.3}
  %s0 = inlined_call_operand.vmem [shape: f32[2,16], index: 0, kind: input, shape index: {}]
  %s1 = inlined_call_operand.vmem [shape: f32[1,32], index: 1, kind: output, shape index: {}]
  $region1: #{squeeze.3} parent=0
    #allocation0 [shape = 'u8[4096]{0}', space=vmem, size = 0x1000, scoped, tag = 'scoped mem for output reshape']
    #allocation1 [shape = 'u8[4096]{0}', space=vmem, size = 0x1000, scoped, tag = 'scoped mem for input reshape']
    %s3 = sshll.u32 1, 2
    %s4 = ssub.s32 %s3, 1
    %v5 = vld [vmem:[%s0] sm:%s4]
    %6 = vst [vmem:[#allocation1] sm:%s4] %v5
    %v7 = vld [vmem:[#allocation1] sm:$0x1]
    %vm8 = vcmask 130048
    %9 = vst.msk [vmem:[#allocation0] sm:$0x1] %vm8, %v7
    %s10 = scalar_lea.vmem [#allocation1], 1
    %v11 = vld [vmem:[%s10] sm:$0x1]
    %12 = vrot.lane.b32.xlu0 %v11, 16
    %v13 = vpop.permute.xlu0 %12
    %vm14 = vcmask 261248
    %15 = vst.msk [vmem:[#allocation0] sm:$0x1] %vm14, %v13
    %s17 = sshll.u32 1, 1
    %s18 = ssub.s32 %s17, 1
    %v20 = vld [vmem:[#allocation0] sm:%s18]
    %s21 = sshll.u32 1, 1
    %s22 = ssub.s32 %s21, 1
    %23 = vst [vmem:[%s1] sm:%s22] %v20

// kernel: tensor_train_forward.1
$region0: #{tensor_train_forward.1}
  #allocation0 [shape = 'u32[]', space=smem, size = 0x4, offset = 0x4, fixed_abs, tag = 'smem constant byte address 0x4 - core index']
  #allocation1 [shape = 'u32[144,128]{1,0:T(1,128)}', space=vmem, size = 0x12000, scoped, tag = 'internal scratch']
  %s0 = inlined_call_operand.vmem [shape: f32[8,128], index: 0, kind: input, shape index: {}]
  %s1 = inlined_call_operand.vmem [shape: f32[128,512], index: 1, kind: input, shape index: {}]
  %s2 = inlined_call_operand.vmem [shape: f32[1,512], index: 2, kind: input, shape index: {}]
  %s3 = inlined_call_operand.vmem [shape: f32[128,128], index: 3, kind: input, shape index: {}]
  %s4 = inlined_call_operand.vmem [shape: f32[1,128], index: 4, kind: input, shape index: {}]
  %s5 = inlined_call_operand.vmem [shape: f32[128,32], index: 5, kind: input, shape index: {}]
  %s6 = inlined_call_operand.vmem [shape: f32[1,32], index: 6, kind: input, shape index: {}]
  %s7 = inlined_call_operand.hbm [shape: f32[8,32], index: 7, kind: output, shape index: {}]
  %s8 = sld [smem:[#allocation0]]
  $region38: #{tensor_train_forward.1} parent=0
    _
  %s10 = ssub.s32 1, %s8
  %s11 = scalar_select 0, %s10, %s8
  $region1: #{tensor_train_forward.1} parent=0
    #allocation2 [shape = 'u8[4096]{0}', space=vmem, size = 0x1000, scoped, tag = 'output window, operand 0, single buffered']
    #allocation3 [shape = 's32[1]{0}', space=sflag, size = 0x4, scoped, tag = 'scoped memory for tensor_train_forward.1']
    %12 = vsyncpa [#allocation3], 0
    // Predicated region
    $region2: #{tensor_train_forward.1} parent=1 // pred_check
      _
    $region3: #{tensor_train_forward.1} parent=1 // pred_check_branch
      %14 = sbr.rel (0) target = $region5
    $region4: #{tensor_train_forward.1} parent=1 // pred_region
      _
    $region5: #{tensor_train_forward.1} parent=1 // pred_fallthru
      _
    // Predicated region
    $region6: #{tensor_train_forward.1} parent=1 // pred_check
      _
    $region7: #{tensor_train_forward.1} parent=1 // pred_check_branch
      %16 = sbr.rel (0) target = $region9
    $region8: #{tensor_train_forward.1} parent=1 // pred_region
      _
    $region9: #{tensor_train_forward.1} parent=1 // pred_fallthru
      _
    // Predicated region
    $region10: #{tensor_train_forward.1} parent=1 // pred_check
      _
    $region11: #{tensor_train_forward.1} parent=1 // pred_check_branch
      %18 = sbr.rel (0) target = $region13
    $region12: #{tensor_train_forward.1} parent=1 // pred_region
      _
    $region13: #{tensor_train_forward.1} parent=1 // pred_fallthru
      _
    // Predicated region
    $region14: #{tensor_train_forward.1} parent=1 // pred_check
      _
    $region15: #{tensor_train_forward.1} parent=1 // pred_check_branch
      %20 = sbr.rel (0) target = $region17
    $region16: #{tensor_train_forward.1} parent=1 // pred_region
      _
    $region17: #{tensor_train_forward.1} parent=1 // pred_fallthru
      _
    // Predicated region
    $region18: #{tensor_train_forward.1} parent=1 // pred_check
      _
    $region19: #{tensor_train_forward.1} parent=1 // pred_check_branch
      %22 = sbr.rel (0) target = $region21
    $region20: #{tensor_train_forward.1} parent=1 // pred_region
      _
    $region21: #{tensor_train_forward.1} parent=1 // pred_fallthru
      _
    // Predicated region
    $region22: #{tensor_train_forward.1} parent=1 // pred_check
      _
    $region23: #{tensor_train_forward.1} parent=1 // pred_check_branch
      %24 = sbr.rel (0) target = $region25
    $region24: #{tensor_train_forward.1} parent=1 // pred_region
      _
    $region25: #{tensor_train_forward.1} parent=1 // pred_fallthru
      _
    // Predicated region
    $region26: #{tensor_train_forward.1} parent=1 // pred_check
      _
    $region27: #{tensor_train_forward.1} parent=1 // pred_check_branch
      %26 = sbr.rel (0) target = $region29
    $region28: #{tensor_train_forward.1} parent=1 // pred_region
      _
    $region29: #{tensor_train_forward.1} parent=1 // pred_fallthru
      _
    %v27 = vld [vmem:[%s0] sm:$0xff]
    %v28 = vld [vmem:[%s1] sm:$0xff]
    %v29 = vld [vmem:[%s1 + $0x8] sm:$0xff]
    %v30 = vld [vmem:[%s1 + $0x10] sm:$0xff]
    %v31 = vld [vmem:[%s1 + $0x18] sm:$0xff]
    %v32 = vld [vmem:[%s1 + $0x20] sm:$0xff]
    %v33 = vld [vmem:[%s1 + $0x28] sm:$0xff]
    %v34 = vld [vmem:[%s1 + $0x30] sm:$0xff]
    %v35 = vld [vmem:[%s1 + $0x38] sm:$0xff]
    %v36 = vld [vmem:[%s1 + $0x40] sm:$0xff]
    %v37 = vld [vmem:[%s1 + $0x48] sm:$0xff]
    %v38 = vld [vmem:[%s1 + $0x50] sm:$0xff]
    %v39 = vld [vmem:[%s1 + $0x58] sm:$0xff]
    %v40 = vld [vmem:[%s1 + $0x60] sm:$0xff]
    %v41 = vld [vmem:[%s1 + $0x68] sm:$0xff]
    %v42 = vld [vmem:[%s1 + $0x70] sm:$0xff]
    %v43 = vld [vmem:[%s1 + $0x78] sm:$0xff]
    %v44 = vld [vmem:[%s1 + $0x80] sm:$0xff]
    %v45 = vld [vmem:[%s1 + $0x88] sm:$0xff]
    %v46 = vld [vmem:[%s1 + $0x90] sm:$0xff]
    %v47 = vld [vmem:[%s1 + $0x98] sm:$0xff]
    %v48 = vld [vmem:[%s1 + $0xa0] sm:$0xff]
    %v49 = vld [vmem:[%s1 + $0xa8] sm:$0xff]
    %v50 = vld [vmem:[%s1 + $0xb0] sm:$0xff]
    %v51 = vld [vmem:[%s1 + $0xb8] sm:$0xff]
    %v52 = vld [vmem:[%s1 + $0xc0] sm:$0xff]
    %v53 = vld [vmem:[%s1 + $0xc8] sm:$0xff]
    %v54 = vld [vmem:[%s1 + $0xd0] sm:$0xff]
    %v55 = vld [vmem:[%s1 + $0xd8] sm:$0xff]
    %v56 = vld [vmem:[%s1 + $0xe0] sm:$0xff]
    %v57 = vld [vmem:[%s1 + $0xe8] sm:$0xff]
    %v58 = vld [vmem:[%s1 + $0xf0] sm:$0xff]
    %v59 = vld [vmem:[%s1 + $0xf8] sm:$0xff]
    %v60 = vld [vmem:[%s1 + $0x100] sm:$0xff]
    %v61 = vld [vmem:[%s1 + $0x108] sm:$0xff]
    %v62 = vld [vmem:[%s1 + $0x110] sm:$0xff]
    %v63 = vld [vmem:[%s1 + $0x118] sm:$0xff]
    %v64 = vld [vmem:[%s1 + $0x120] sm:$0xff]
    %v65 = vld [vmem:[%s1 + $0x128] sm:$0xff]
    %v66 = vld [vmem:[%s1 + $0x130] sm:$0xff]
    %v67 = vld [vmem:[%s1 + $0x138] sm:$0xff]
    %v68 = vld [vmem:[%s1 + $0x140] sm:$0xff]
    %v69 = vld [vmem:[%s1 + $0x148] sm:$0xff]
    %v70 = vld [vmem:[%s1 + $0x150] sm:$0xff]
    %v71 = vld [vmem:[%s1 + $0x158] sm:$0xff]
    %v72 = vld [vmem:[%s1 + $0x160] sm:$0xff]
    %v73 = vld [vmem:[%s1 + $0x168] sm:$0xff]
    %v74 = vld [vmem:[%s1 + $0x170] sm:$0xff]
    %v75 = vld [vmem:[%s1 + $0x178] sm:$0xff]
    %v76 = vld [vmem:[%s1 + $0x180] sm:$0xff]
    %v77 = vld [vmem:[%s1 + $0x188] sm:$0xff]
    %v78 = vld [vmem:[%s1 + $0x190] sm:$0xff]
    %v79 = vld [vmem:[%s1 + $0x198] sm:$0xff]
    %v80 = vld [vmem:[%s1 + $0x1a0] sm:$0xff]
    %v81 = vld [vmem:[%s1 + $0x1a8] sm:$0xff]
    %v82 = vld [vmem:[%s1 + $0x1b0] sm:$0xff]
    %v83 = vld [vmem:[%s1 + $0x1b8] sm:$0xff]
    %v84 = vld [vmem:[%s1 + $0x1c0] sm:$0xff]
    %v85 = vld [vmem:[%s1 + $0x1c8] sm:$0xff]
    %v86 = vld [vmem:[%s1 + $0x1d0] sm:$0xff]
    %v87 = vld [vmem:[%s1 + $0x1d8] sm:$0xff]
    %v88 = vld [vmem:[%s1 + $0x1e0] sm:$0xff]
    %v89 = vld [vmem:[%s1 + $0x1e8] sm:$0xff]
    %v90 = vld [vmem:[%s1 + $0x1f0] sm:$0xff]
    %v91 = vld [vmem:[%s1 + $0x1f8] sm:$0xff]
    %v92 = vld [vmem:[%s2] sm:$0xf]
    %v94 = vlaneseq
    %v95 = vshrl.u32 %v94, 7
    %v96 = vsub.s32 0, %v95
    %v97 = vrot.slane %v92, %v96
    %v98 = vlaneseq
    %v99 = vshrl.u32 %v98, 7
    %v100 = vsub.s32 1, %v99
    %v101 = vrot.slane %v92, %v100
    %v102 = vlaneseq
    %v103 = vshrl.u32 %v102, 7
    %v104 = vsub.s32 2, %v103
    %v105 = vrot.slane %v92, %v104
    %v106 = vlaneseq
    %v107 = vshrl.u32 %v106, 7
    %v108 = vsub.s32 3, %v107
    %v109 = vrot.slane %v92, %v108
    %114 = vmatprep.subr.mxu0 %v89
    %115 = vmatpush1.msra.mxu0 %v88
    %116 = vmatprep.subr.mxu0 %v85
    %117 = vmatpush1.msra.mxu0 %v84
    %118 = vmatprep.subr.mxu0 %v81
    %119 = vmatpush1.msra.mxu0 %v80
    %120 = vmatprep.subr.mxu0 %v77
    %121 = vmatpush1.msra.mxu0 %v76
    %122 = vmatprep.subr.mxu0 %v73
    %123 = vmatpush1.msra.mxu0 %v72
    %124 = vmatprep.subr.mxu0 %v69
    %125 = vmatpush1.msra.mxu0 %v68
    %126 = vmatprep.subr.mxu0 %v65
    %127 = vmatpush1.msra.mxu0 %v64
    %128 = vmatprep.subr.mxu0 %v61
    %129 = vmatpush1.msra.mxu0 %v60
    %130 = vmatprep.subr.mxu0 %v57
    %131 = vmatpush1.msra.mxu0 %v56
    %132 = vmatprep.subr.mxu0 %v53
    %133 = vmatpush1.msra.mxu0 %v52
    %134 = vmatprep.subr.mxu0 %v49
    %135 = vmatpush1.msra.mxu0 %v48
    %136 = vmatprep.subr.mxu0 %v45
    %137 = vmatpush1.msra.mxu0 %v44
    %138 = vmatprep.subr.mxu0 %v41
    %139 = vmatpush1.msra.mxu0 %v40
    %140 = vmatprep.subr.mxu0 %v37
    %141 = vmatpush1.msra.mxu0 %v36
    %142 = vmatprep.subr.mxu0 %v33
    %143 = vmatpush1.msra.mxu0 %v32
    %144 = vmatprep.subr.mxu0 %v29
    %145 = vmatpush1.msra.mxu0 %v28
    %146 = vmatprep.subr.mxu0 0.0
    %147 = vmatpush2.msra.mxu0 0.0
    %148 = vmatprep.subr.mxu0 0.0
    %149 = vmatpush2.msra.mxu0 0.0
    %150 = vmatprep.subr.mxu0 0.0
    %151 = vmatpush2.msra.mxu0 0.0
    %152 = vmatprep.subr.mxu0 0.0
    %153 = vmatpush2.msra.mxu0 0.0
    %154 = vmatprep.subr.mxu0 0.0
    %155 = vmatpush2.msra.mxu0 0.0
    %156 = vmatprep.subr.mxu0 0.0
    %157 = vmatpush2.msra.mxu0 0.0
    %158 = vmatprep.subr.mxu0 0.0
    %159 = vmatpush2.msra.mxu0 0.0
    %160 = vmatprep.subr.mxu0 0.0
    %161 = vmatpush2.msra.mxu0 0.0
    %162 = vmatprep.subr.mxu0 0.0
    %163 = vmatpush2.msra.mxu0 0.0
    %164 = vmatprep.subr.mxu0 0.0
    %165 = vmatpush2.msra.mxu0 0.0
    %166 = vmatprep.subr.mxu0 0.0
    %167 = vmatpush2.msra.mxu0 0.0
    %168 = vmatprep.subr.mxu0 0.0
    %169 = vmatpush2.msra.mxu0 0.0
    %170 = vmatprep.subr.mxu0 0.0
    %171 = vmatpush2.msra.mxu0 0.0
    %172 = vmatprep.subr.mxu0 0.0
    %173 = vmatpush2.msra.mxu0 0.0
    %174 = vmatprep.subr.mxu0 0.0
    %175 = vmatpush2.msra.mxu0 0.0
    %176 = vmatprep.subr.mxu0 0.0
    %177 = vmatpush2.msra.mxu0 0.0
    %178 = vmatprep.mubr.f32.mxu0 0.0
    %179 = vmatmul.mubr.f32.gmra.mxu0 %v27
    %v180 = vpop.f32.mrf.mxu0
    %v181 = vadd.f32 %v97, %v180
    %v182 = vpop.f32.mrf.mxu0
    %v183 = vadd.f32 %v101, %v182
    %184 = vdwg.mxu0
    %185 = vmatprep.subr.mxu0 %v91
    %186 = vmatpush1.msra.mxu0 %v90
    %187 = vmatprep.subr.mxu0 %v87
    %188 = vmatpush1.msra.mxu0 %v86
    %189 = vmatprep.subr.mxu0 %v83
    %190 = vmatpush1.msra.mxu0 %v82
    %191 = vmatprep.subr.mxu0 %v79
    %192 = vmatpush1.msra.mxu0 %v78
    %193 = vmatprep.subr.mxu0 %v75
    %194 = vmatpush1.msra.mxu0 %v74
    %195 = vmatprep.subr.mxu0 %v71
    %196 = vmatpush1.msra.mxu0 %v70
    %197 = vmatprep.subr.mxu0 %v67
    %198 = vmatpush1.msra.mxu0 %v66
    %199 = vmatprep.subr.mxu0 %v63
    %200 = vmatpush1.msra.mxu0 %v62
    %201 = vmatprep.subr.mxu0 %v59
    %202 = vmatpush1.msra.mxu0 %v58
    %203 = vmatprep.subr.mxu0 %v55
    %204 = vmatpush1.msra.mxu0 %v54
    %205 = vmatprep.subr.mxu0 %v51
    %206 = vmatpush1.msra.mxu0 %v50
    %207 = vmatprep.subr.mxu0 %v47
    %208 = vmatpush1.msra.mxu0 %v46
    %209 = vmatprep.subr.mxu0 %v43
    %210 = vmatpush1.msra.mxu0 %v42
    %211 = vmatprep.subr.mxu0 %v39
    %212 = vmatpush1.msra.mxu0 %v38
    %213 = vmatprep.subr.mxu0 %v35
    %214 = vmatpush1.msra.mxu0 %v34
    %215 = vmatprep.subr.mxu0 %v31
    %216 = vmatpush1.msra.mxu0 %v30
    %217 = vmatprep.subr.mxu0 0.0
    %218 = vmatpush2.msra.mxu0 0.0
    %219 = vmatprep.subr.mxu0 0.0
    %220 = vmatpush2.msra.mxu0 0.0
    %221 = vmatprep.subr.mxu0 0.0
    %222 = vmatpush2.msra.mxu0 0.0
    %223 = vmatprep.subr.mxu0 0.0
    %224 = vmatpush2.msra.mxu0 0.0
    %225 = vmatprep.subr.mxu0 0.0
    %226 = vmatpush2.msra.mxu0 0.0
    %227 = vmatprep.subr.mxu0 0.0
    %228 = vmatpush2.msra.mxu0 0.0
    %229 = vmatprep.subr.mxu0 0.0
    %230 = vmatpush2.msra.mxu0 0.0
    %231 = vmatprep.subr.mxu0 0.0
    %232 = vmatpush2.msra.mxu0 0.0
    %233 = vmatprep.subr.mxu0 0.0
    %234 = vmatpush2.msra.mxu0 0.0
    %235 = vmatprep.subr.mxu0 0.0
    %236 = vmatpush2.msra.mxu0 0.0
    %237 = vmatprep.subr.mxu0 0.0
    %238 = vmatpush2.msra.mxu0 0.0
    %239 = vmatprep.subr.mxu0 0.0
    %240 = vmatpush2.msra.mxu0 0.0
    %241 = vmatprep.subr.mxu0 0.0
    %242 = vmatpush2.msra.mxu0 0.0
    %243 = vmatprep.subr.mxu0 0.0
    %244 = vmatpush2.msra.mxu0 0.0
    %245 = vmatprep.subr.mxu0 0.0
    %246 = vmatpush2.msra.mxu0 0.0
    %247 = vmatprep.subr.mxu0 0.0
    %248 = vmatpush2.msra.mxu0 0.0
    %249 = vmatprep.mubr.f32.mxu0 0.0
    %250 = vmatmul.mubr.f32.gmra.mxu0 %v27
    %v251 = vpop.f32.mrf.mxu0
    %v252 = vadd.f32 %v105, %v251
    %v253 = vpop.f32.mrf.mxu0
    %v254 = vadd.f32 %v109, %v253
    %255 = vdwg.mxu0
    %v256 = vld [vmem:[%s3] sm:$0xff]
    %v257 = vld [vmem:[%s3 + $0x8] sm:$0xff]
    %v258 = vld [vmem:[%s3 + $0x10] sm:$0xff]
    %v259 = vld [vmem:[%s3 + $0x18] sm:$0xff]
    %v260 = vld [vmem:[%s3 + $0x20] sm:$0xff]
    %v261 = vld [vmem:[%s3 + $0x28] sm:$0xff]
    %v262 = vld [vmem:[%s3 + $0x30] sm:$0xff]
    %v263 = vld [vmem:[%s3 + $0x38] sm:$0xff]
    %v264 = vld [vmem:[%s3 + $0x40] sm:$0xff]
    %v265 = vld [vmem:[%s3 + $0x48] sm:$0xff]
    %v266 = vld [vmem:[%s3 + $0x50] sm:$0xff]
    %v267 = vld [vmem:[%s3 + $0x58] sm:$0xff]
    %v268 = vld [vmem:[%s3 + $0x60] sm:$0xff]
    %v269 = vld [vmem:[%s3 + $0x68] sm:$0xff]
    %v270 = vld [vmem:[%s3 + $0x70] sm:$0xff]
    %v271 = vld [vmem:[%s3 + $0x78] sm:$0xff]
    %v272 = vld [vmem:[%s4] sm:$0x1]
    %v274 = vlaneseq
    %v275 = vshrl.u32 %v274, 7
    %v276 = vsub.s32 0, %v275
    %v277 = vrot.slane %v272, %v276
    %v279 = vmul.f32 %v277, %v181
    %280 = vmatprep.subr.mxu0 0.0
    %281 = vmatpush1.msra.mxu0 %v271
    %282 = vmatprep.subr.mxu0 0.0
    %283 = vmatpush1.msra.mxu0 %v270
    %284 = vmatprep.subr.mxu0 0.0
    %285 = vmatpush1.msra.mxu0 %v269
    %286 = vmatprep.subr.mxu0 0.0
    %287 = vmatpush1.msra.mxu0 %v268
    %288 = vmatprep.subr.mxu0 0.0
    %289 = vmatpush1.msra.mxu0 %v267
    %290 = vmatprep.subr.mxu0 0.0
    %291 = vmatpush1.msra.mxu0 %v266
    %292 = vmatprep.subr.mxu0 0.0
    %293 = vmatpush1.msra.mxu0 %v265
    %294 = vmatprep.subr.mxu0 0.0
    %295 = vmatpush1.msra.mxu0 %v264
    %296 = vmatprep.subr.mxu0 0.0
    %297 = vmatpush1.msra.mxu0 %v263
    %298 = vmatprep.subr.mxu0 0.0
    %299 = vmatpush1.msra.mxu0 %v262
    %300 = vmatprep.subr.mxu0 0.0
    %301 = vmatpush1.msra.mxu0 %v261
    %302 = vmatprep.subr.mxu0 0.0
    %303 = vmatpush1.msra.mxu0 %v260
    %304 = vmatprep.subr.mxu0 0.0
    %305 = vmatpush1.msra.mxu0 %v259
    %306 = vmatprep.subr.mxu0 0.0
    %307 = vmatpush1.msra.mxu0 %v258
    %308 = vmatprep.subr.mxu0 0.0
    %309 = vmatpush1.msra.mxu0 %v257
    %310 = vmatprep.subr.mxu0 0.0
    %311 = vmatpush1.msra.mxu0 %v256
    %312 = vmatprep.subr.mxu0 0.0
    %313 = vmatpush2.msra.mxu0 0.0
    %314 = vmatprep.subr.mxu0 0.0
    %315 = vmatpush2.msra.mxu0 0.0
    %316 = vmatprep.subr.mxu0 0.0
    %317 = vmatpush2.msra.mxu0 0.0
    %318 = vmatprep.subr.mxu0 0.0
    %319 = vmatpush2.msra.mxu0 0.0
    %320 = vmatprep.subr.mxu0 0.0
    %321 = vmatpush2.msra.mxu0 0.0
    %322 = vmatprep.subr.mxu0 0.0
    %323 = vmatpush2.msra.mxu0 0.0
    %324 = vmatprep.subr.mxu0 0.0
    %325 = vmatpush2.msra.mxu0 0.0
    %326 = vmatprep.subr.mxu0 0.0
    %327 = vmatpush2.msra.mxu0 0.0
    %328 = vmatprep.subr.mxu0 0.0
    %329 = vmatpush2.msra.mxu0 0.0
    %330 = vmatprep.subr.mxu0 0.0
    %331 = vmatpush2.msra.mxu0 0.0
    %332 = vmatprep.subr.mxu0 0.0
    %333 = vmatpush2.msra.mxu0 0.0
    %334 = vmatprep.subr.mxu0 0.0
    %335 = vmatpush2.msra.mxu0 0.0
    %336 = vmatprep.subr.mxu0 0.0
    %337 = vmatpush2.msra.mxu0 0.0
    %338 = vmatprep.subr.mxu0 0.0
    %339 = vmatpush2.msra.mxu0 0.0
    %340 = vmatprep.subr.mxu0 0.0
    %341 = vmatpush2.msra.mxu0 0.0
    %342 = vmatprep.subr.mxu0 0.0
    %343 = vmatpush2.msra.mxu0 0.0
    %344 = vmatprep.mubr.f32.mxu0 0.0
    %345 = vmatmul.mubr.f32.gmra.mxu0 %v279
    %v346 = vpop.f32.mrf.mxu0
    %v347 = vadd.f32 %v277, %v346
    %v348 = vpop.f32.mrf.mxu0
    %349 = vdwg.mxu0
    %v350 = vmul.f32 %v347, %v183
    %351 = vmatprep.subr.mxu0 0.0
    %352 = vmatpush1.msra.mxu0 %v271
    %353 = vmatprep.subr.mxu0 0.0
    %354 = vmatpush1.msra.mxu0 %v270
    %355 = vmatprep.subr.mxu0 0.0
    %356 = vmatpush1.msra.mxu0 %v269
    %357 = vmatprep.subr.mxu0 0.0
    %358 = vmatpush1.msra.mxu0 %v268
    %359 = vmatprep.subr.mxu0 0.0
    %360 = vmatpush1.msra.mxu0 %v267
    %361 = vmatprep.subr.mxu0 0.0
    %362 = vmatpush1.msra.mxu0 %v266
    %363 = vmatprep.subr.mxu0 0.0
    %364 = vmatpush1.msra.mxu0 %v265
    %365 = vmatprep.subr.mxu0 0.0
    %366 = vmatpush1.msra.mxu0 %v264
    %367 = vmatprep.subr.mxu0 0.0
    %368 = vmatpush1.msra.mxu0 %v263
    %369 = vmatprep.subr.mxu0 0.0
    %370 = vmatpush1.msra.mxu0 %v262
    %371 = vmatprep.subr.mxu0 0.0
    %372 = vmatpush1.msra.mxu0 %v261
    %373 = vmatprep.subr.mxu0 0.0
    %374 = vmatpush1.msra.mxu0 %v260
    %375 = vmatprep.subr.mxu0 0.0
    %376 = vmatpush1.msra.mxu0 %v259
    %377 = vmatprep.subr.mxu0 0.0
    %378 = vmatpush1.msra.mxu0 %v258
    %379 = vmatprep.subr.mxu0 0.0
    %380 = vmatpush1.msra.mxu0 %v257
    %381 = vmatprep.subr.mxu0 0.0
    %382 = vmatpush1.msra.mxu0 %v256
    %383 = vmatprep.subr.mxu0 0.0
    %384 = vmatpush2.msra.mxu0 0.0
    %385 = vmatprep.subr.mxu0 0.0
    %386 = vmatpush2.msra.mxu0 0.0
    %387 = vmatprep.subr.mxu0 0.0
    %388 = vmatpush2.msra.mxu0 0.0
    %389 = vmatprep.subr.mxu0 0.0
    %390 = vmatpush2.msra.mxu0 0.0
    %391 = vmatprep.subr.mxu0 0.0
    %392 = vmatpush2.msra.mxu0 0.0
    %393 = vmatprep.subr.mxu0 0.0
    %394 = vmatpush2.msra.mxu0 0.0
    %395 = vmatprep.subr.mxu0 0.0
    %396 = vmatpush2.msra.mxu0 0.0
    %397 = vmatprep.subr.mxu0 0.0
    %398 = vmatpush2.msra.mxu0 0.0
    %399 = vmatprep.subr.mxu0 0.0
    %400 = vmatpush2.msra.mxu0 0.0
    %401 = vmatprep.subr.mxu0 0.0
    %402 = vmatpush2.msra.mxu0 0.0
    %403 = vmatprep.subr.mxu0 0.0
    %404 = vmatpush2.msra.mxu0 0.0
    %405 = vmatprep.subr.mxu0 0.0
    %406 = vmatpush2.msra.mxu0 0.0
    %407 = vmatprep.subr.mxu0 0.0
    %408 = vmatpush2.msra.mxu0 0.0
    %409 = vmatprep.subr.mxu0 0.0
    %410 = vmatpush2.msra.mxu0 0.0
    %411 = vmatprep.subr.mxu0 0.0
    %412 = vmatpush2.msra.mxu0 0.0
    %413 = vmatprep.subr.mxu0 0.0
    %414 = vmatpush2.msra.mxu0 0.0
    %415 = vmatprep.mubr.f32.mxu0 0.0
    %416 = vmatmul.mubr.f32.gmra.mxu0 %v350
    %v417 = vpop.f32.mrf.mxu0
    %v418 = vadd.f32 %v277, %v417
    %v419 = vpop.f32.mrf.mxu0
    %420 = vdwg.mxu0
    %v421 = vmul.f32 %v418, %v252
    %422 = vmatprep.subr.mxu0 0.0
    %423 = vmatpush1.msra.mxu0 %v271
    %424 = vmatprep.subr.mxu0 0.0
    %425 = vmatpush1.msra.mxu0 %v270
    %426 = vmatprep.subr.mxu0 0.0
    %427 = vmatpush1.msra.mxu0 %v269
    %428 = vmatprep.subr.mxu0 0.0
    %429 = vmatpush1.msra.mxu0 %v268
    %430 = vmatprep.subr.mxu0 0.0
    %431 = vmatpush1.msra.mxu0 %v267
    %432 = vmatprep.subr.mxu0 0.0
    %433 = vmatpush1.msra.mxu0 %v266
    %434 = vmatprep.subr.mxu0 0.0
    %435 = vmatpush1.msra.mxu0 %v265
    %436 = vmatprep.subr.mxu0 0.0
    %437 = vmatpush1.msra.mxu0 %v264
    %438 = vmatprep.subr.mxu0 0.0
    %439 = vmatpush1.msra.mxu0 %v263
    %440 = vmatprep.subr.mxu0 0.0
    %441 = vmatpush1.msra.mxu0 %v262
    %442 = vmatprep.subr.mxu0 0.0
    %443 = vmatpush1.msra.mxu0 %v261
    %444 = vmatprep.subr.mxu0 0.0
    %445 = vmatpush1.msra.mxu0 %v260
    %446 = vmatprep.subr.mxu0 0.0
    %447 = vmatpush1.msra.mxu0 %v259
    %448 = vmatprep.subr.mxu0 0.0
    %449 = vmatpush1.msra.mxu0 %v258
    %450 = vmatprep.subr.mxu0 0.0
    %451 = vmatpush1.msra.mxu0 %v257
    %452 = vmatprep.subr.mxu0 0.0
    %453 = vmatpush1.msra.mxu0 %v256
    %454 = vmatprep.subr.mxu0 0.0
    %455 = vmatpush2.msra.mxu0 0.0
    %456 = vmatprep.subr.mxu0 0.0
    %457 = vmatpush2.msra.mxu0 0.0
    %458 = vmatprep.subr.mxu0 0.0
    %459 = vmatpush2.msra.mxu0 0.0
    %460 = vmatprep.subr.mxu0 0.0
    %461 = vmatpush2.msra.mxu0 0.0
    %462 = vmatprep.subr.mxu0 0.0
    %463 = vmatpush2.msra.mxu0 0.0
    %464 = vmatprep.subr.mxu0 0.0
    %465 = vmatpush2.msra.mxu0 0.0
    %466 = vmatprep.subr.mxu0 0.0
    %467 = vmatpush2.msra.mxu0 0.0
    %468 = vmatprep.subr.mxu0 0.0
    %469 = vmatpush2.msra.mxu0 0.0
    %470 = vmatprep.subr.mxu0 0.0
    %471 = vmatpush2.msra.mxu0 0.0
    %472 = vmatprep.subr.mxu0 0.0
    %473 = vmatpush2.msra.mxu0 0.0
    %474 = vmatprep.subr.mxu0 0.0
    %475 = vmatpush2.msra.mxu0 0.0
    %476 = vmatprep.subr.mxu0 0.0
    %477 = vmatpush2.msra.mxu0 0.0
    %478 = vmatprep.subr.mxu0 0.0
    %479 = vmatpush2.msra.mxu0 0.0
    %480 = vmatprep.subr.mxu0 0.0
    %481 = vmatpush2.msra.mxu0 0.0
    %482 = vmatprep.subr.mxu0 0.0
    %483 = vmatpush2.msra.mxu0 0.0
    %484 = vmatprep.subr.mxu0 0.0
    %485 = vmatpush2.msra.mxu0 0.0
    %486 = vmatprep.mubr.f32.mxu0 0.0
    %487 = vmatmul.mubr.f32.gmra.mxu0 %v421
    %v488 = vpop.f32.mrf.mxu0
    %v489 = vadd.f32 %v277, %v488
    %v490 = vpop.f32.mrf.mxu0
    %491 = vdwg.mxu0
    %v492 = vmul.f32 %v489, %v254
    %v493 = vld [vmem:[%s5] sm:$0xff]
    %v494 = vld [vmem:[%s5 + $0x8] sm:$0xff]
    %v495 = vld [vmem:[%s5 + $0x10] sm:$0xff]
    %v496 = vld [vmem:[%s5 + $0x18] sm:$0xff]
    %v497 = vld [vmem:[%s5 + $0x20] sm:$0xff]
    %v498 = vld [vmem:[%s5 + $0x28] sm:$0xff]
    %v499 = vld [vmem:[%s5 + $0x30] sm:$0xff]
    %v500 = vld [vmem:[%s5 + $0x38] sm:$0xff]
    %v501 = vld [vmem:[%s5 + $0x40] sm:$0xff]
    %v502 = vld [vmem:[%s5 + $0x48] sm:$0xff]
    %v503 = vld [vmem:[%s5 + $0x50] sm:$0xff]
    %v504 = vld [vmem:[%s5 + $0x58] sm:$0xff]
    %v505 = vld [vmem:[%s5 + $0x60] sm:$0xff]
    %v506 = vld [vmem:[%s5 + $0x68] sm:$0xff]
    %v507 = vld [vmem:[%s5 + $0x70] sm:$0xff]
    %v508 = vld [vmem:[%s5 + $0x78] sm:$0xff]
    %v509 = vld [vmem:[%s6] sm:$0x1]
    %v511 = vlaneseq
    %v512 = vshrl.u32 %v511, 7
    %v513 = vsub.s32 0, %v512
    %v514 = vrot.slane %v509, %v513
    %516 = vmatprep.subr.mxu0 0.0
    %517 = vmatpush1.msra.mxu0 %v508
    %518 = vmatprep.subr.mxu0 0.0
    %519 = vmatpush1.msra.mxu0 %v507
    %520 = vmatprep.subr.mxu0 0.0
    %521 = vmatpush1.msra.mxu0 %v506
    %522 = vmatprep.subr.mxu0 0.0
    %523 = vmatpush1.msra.mxu0 %v505
    %524 = vmatprep.subr.mxu0 0.0
    %525 = vmatpush1.msra.mxu0 %v504
    %526 = vmatprep.subr.mxu0 0.0
    %527 = vmatpush1.msra.mxu0 %v503
    %528 = vmatprep.subr.mxu0 0.0
    %529 = vmatpush1.msra.mxu0 %v502
    %530 = vmatprep.subr.mxu0 0.0
    %531 = vmatpush1.msra.mxu0 %v501
    %532 = vmatprep.subr.mxu0 0.0
    %533 = vmatpush1.msra.mxu0 %v500
    %534 = vmatprep.subr.mxu0 0.0
    %535 = vmatpush1.msra.mxu0 %v499
    %536 = vmatprep.subr.mxu0 0.0
    %537 = vmatpush1.msra.mxu0 %v498
    %538 = vmatprep.subr.mxu0 0.0
    %539 = vmatpush1.msra.mxu0 %v497
    %540 = vmatprep.subr.mxu0 0.0
    %541 = vmatpush1.msra.mxu0 %v496
    %542 = vmatprep.subr.mxu0 0.0
    %543 = vmatpush1.msra.mxu0 %v495
    %544 = vmatprep.subr.mxu0 0.0
    %545 = vmatpush1.msra.mxu0 %v494
    %546 = vmatprep.subr.mxu0 0.0
    %547 = vmatpush1.msra.mxu0 %v493
    %548 = vmatprep.subr.mxu0 0.0
    %549 = vmatpush2.msra.mxu0 0.0
    %550 = vmatprep.subr.mxu0 0.0
    %551 = vmatpush2.msra.mxu0 0.0
    %552 = vmatprep.subr.mxu0 0.0
    %553 = vmatpush2.msra.mxu0 0.0
    %554 = vmatprep.subr.mxu0 0.0
    %555 = vmatpush2.msra.mxu0 0.0
    %556 = vmatprep.subr.mxu0 0.0
    %557 = vmatpush2.msra.mxu0 0.0
    %558 = vmatprep.subr.mxu0 0.0
    %559 = vmatpush2.msra.mxu0 0.0
    %560 = vmatprep.subr.mxu0 0.0
    %561 = vmatpush2.msra.mxu0 0.0
    %562 = vmatprep.subr.mxu0 0.0
    %563 = vmatpush2.msra.mxu0 0.0
    %564 = vmatprep.subr.mxu0 0.0
    %565 = vmatpush2.msra.mxu0 0.0
    %566 = vmatprep.subr.mxu0 0.0
    %567 = vmatpush2.msra.mxu0 0.0
    %568 = vmatprep.subr.mxu0 0.0
    %569 = vmatpush2.msra.mxu0 0.0
    %570 = vmatprep.subr.mxu0 0.0
    %571 = vmatpush2.msra.mxu0 0.0
    %572 = vmatprep.subr.mxu0 0.0
    %573 = vmatpush2.msra.mxu0 0.0
    %574 = vmatprep.subr.mxu0 0.0
    %575 = vmatpush2.msra.mxu0 0.0
    %576 = vmatprep.subr.mxu0 0.0
    %577 = vmatpush2.msra.mxu0 0.0
    %578 = vmatprep.subr.mxu0 0.0
    %579 = vmatpush2.msra.mxu0 0.0
    %580 = vmatprep.mubr.f32.mxu0 0.0
    %581 = vmatmul.mubr.f32.gmra.mxu0 %v492
    %v582 = vpop.f32.mrf.mxu0
    %v583 = vadd.f32 %v514, %v582
    %v584 = vpop.f32.mrf.mxu0
    %585 = vdwg.mxu0
    %vm586 = vcmask 261120
    %587 = vst.msk [vmem:[#allocation2] sm:$0xff] %vm586, %v583
    // Predicated region
    $region30: #{tensor_train_forward.1} parent=1 // pred_check
      _
    $region31: #{tensor_train_forward.1} parent=1 // pred_check_branch
      %589 = sbr.rel (0) target = $region33
    $region32: #{tensor_train_forward.1} parent=1 // pred_region
      %s591 = ssub.s32 128, 128
      %592 = vsyncadd [#allocation3], %s591
      %s594 = sshll.u32 [#allocation2], 4
      %s595 = int_to_ptr.vmem [resolvable:$true] %s594
      %597 = dma.vmem_to_hbm [thread:$0]  %s595, 128, %s7, [#allocation3]
    $region33: #{tensor_train_forward.1} parent=1 // pred_fallthru
      _
    // Predicated region
    $region34: #{tensor_train_forward.1} parent=1 // pred_check
      _
    $region35: #{tensor_train_forward.1} parent=1 // pred_check_branch
      %599 = sbr.rel (0) target = $region37
    $region36: #{tensor_train_forward.1} parent=1 // pred_region
      %600 = dma.done [#allocation3], 128
    $region37: #{tensor_train_forward.1} parent=1 // pred_fallthru
      _
    %601 = vsyncpa [#allocation3], 1

</llo_original>
